<compile_context>
chip_gen: v6e
topology: v6e:2x2x1
jax: 0.10.0
libtpu: 0.0.40
codegen_flags: <defaults>
</compile_context>

<pallas_src>
import functools

import jax
import jax.numpy as jnp
from jax import lax
from jax.experimental import pallas as pl
from jax.experimental.pallas import tpu as pltpu

_EPS = 1e-7


def _round_up(a, b):
    return (a + b - 1) // b * b


def _gwd_kernel(pred_ref, tgt_ref, w_ref, out_ref, *, fun, tau, alpha,
                normalize, reduce_partial, block_rows):
    """GWD loss (xy_wh_r_2_xy_sigma + gwd_loss + postprocess) * weight.

    pred_ref / tgt_ref: (5, block_rows, LANES) f32 (planes: x, y, w, h, r)
    w_ref:              (block_rows, LANES) f32   (per-box weight, 0 = padding)
    out_ref:            (block_rows, LANES) per-box weighted loss, or
                        (8, LANES) per-tile partial sums when reduce_partial.
    """

    def to_gaussian(ref):
        # xy_wh_r -> (xy, Sigma) with Sigma = R diag((w/2)^2, (h/2)^2) R^T
        x = ref[0]
        y = ref[1]
        w = jnp.clip(ref[2], _EPS, 1e7)
        h = jnp.clip(ref[3], _EPS, 1e7)
        r = ref[4]
        c = jnp.cos(r)
        s = jnp.sin(r)
        sw = (0.5 * w) ** 2
        sh = (0.5 * h) ** 2
        a = c * c * sw + s * s * sh          # Sigma[0, 0]
        b = c * s * (sw - sh)                # Sigma[0, 1] == Sigma[1, 0]
        d = s * s * sw + c * c * sh          # Sigma[1, 1]
        return x, y, a, b, d

    xp, yp, ap, bp, dp = to_gaussian(pred_ref)
    xt, yt, at, bt, dt = to_gaussian(tgt_ref)

    # --- gwd_loss ---
    xy_distance = (xp - xt) ** 2 + (yp - yt) ** 2

    whr_distance = (ap + dp) + (at + dt)                    # Tr(Sp) + Tr(St)
    t_tr = ap * at + 2.0 * bp * bt + dp * dt                # Tr(Sp @ St)
    det_p = ap * dp - bp * bp
    det_t = at * dt - bt * bt
    t_det_sqrt = jnp.sqrt(jnp.maximum(det_p * det_t, _EPS))
    whr_distance = whr_distance - 2.0 * jnp.sqrt(
        jnp.maximum(t_tr + 2.0 * t_det_sqrt, _EPS))

    distance = jnp.sqrt(
        jnp.maximum(xy_distance + (alpha * alpha) * whr_distance, _EPS))

    if normalize:
        # reference: distance / (2 * t_det_sqrt^(1/4))
        #         == distance * 0.5 * t_det_sqrt^(-1/4),  x^(-1/4)=rsqrt(sqrt(x))
        inv_scale = lax.rsqrt(jnp.sqrt(jnp.maximum(t_det_sqrt, _EPS)))
        distance = distance * (0.5 * inv_scale)

    # --- postprocess ---
    if fun == 'log1p':
        distance = jnp.log1p(distance)
    elif fun == 'sqrt':
        distance = jnp.sqrt(jnp.maximum(distance, _EPS))
    elif fun == 'none':
        pass
    else:
        raise ValueError(f'Invalid non-linear function {fun}')
    if tau >= 1.0:
        distance = 1.0 - 1.0 / (tau + distance)

    loss = distance * w_ref[...]

    if reduce_partial:
        # Reduce groups of 8 sublanes with cheap vreg adds; dense (8, LANES)
        # partial keeps stores unmasked and the grid axis parallel.
        part = loss[0:8, :]
        for k in range(1, block_rows // 8):
            part = part + loss[k * 8:(k + 1) * 8, :]
        out_ref[...] = part
    else:
        out_ref[...] = loss


def gd_loss_gwd(pred, target, weight=None, avg_factor=None, reduction='mean',
                *, fun='log1p', tau=0.0, alpha=1.0, normalize=True,
                loss_weight=1.0):
    """GDLoss('gwd', 'xy_wh_r').forward in JAX + Pallas.

    pred, target: (N, 5) float32 boxes [x, y, w, h, r]
    weight:       optional (N,) float32 per-box weight
    """
    assert pred.shape == target.shape and pred.shape[-1] == 5
    assert reduction in ('none', 'mean', 'sum')
    n = pred.shape[0]

    # TODO(synk): GDLoss.forward's data-dependent early exit when all weights
    # are zero ((pred * weight).sum()) is left to the caller; this implements
    # the main loss path.

    # Lane/sublane-dense layout: box i -> (i // lanes, i % lanes).
    lanes = 128 if n <= 4096 else 512
    rows = pl.cdiv(n, lanes)
    block_rows = min(_round_up(rows, 8), max(8, 32768 // lanes))
    rows_pad = _round_up(rows, block_rows)
    n_pad = rows_pad * lanes
    grid = rows_pad // block_rows

    def prep(b):
        b = jnp.asarray(b, jnp.float32)
        b = jnp.pad(b, ((0, n_pad - n), (0, 0)))
        return b.T.reshape(5, rows_pad, lanes)   # (5, rows_pad, lanes) SoA

    pred_t = prep(pred)
    tgt_t = prep(target)

    valid = (jnp.arange(n_pad) < n).astype(jnp.float32)
    if weight is None:
        w_full = valid
    else:
        w_full = jnp.pad(jnp.asarray(weight, jnp.float32), (0, n_pad - n)) * valid
    w_full = w_full.reshape(rows_pad, lanes)

    reduce_partial = reduction in ('mean', 'sum')

    kernel = functools.partial(
        _gwd_kernel, fun=fun, tau=tau, alpha=alpha, normalize=normalize,
        reduce_partial=reduce_partial, block_rows=block_rows)

    if reduce_partial:
        out_shape = jax.ShapeDtypeStruct((grid * 8, lanes), jnp.float32)
        out_spec = pl.BlockSpec((8, lanes), lambda i: (i, 0))
        out_bytes = grid * 8 * lanes * 4
    else:
        out_shape = jax.ShapeDtypeStruct((rows_pad, lanes), jnp.float32)
        out_spec = pl.BlockSpec((block_rows, lanes), lambda i: (i, 0))
        out_bytes = n_pad * 4

    cost = pl.CostEstimate(
        flops=64 * n_pad,
        transcendentals=8 * n_pad,
        bytes_accessed=11 * 4 * n_pad + out_bytes)

    result = pl.pallas_call(
        kernel,
        out_shape=out_shape,
        grid_spec=pltpu.PrefetchScalarGridSpec(
            num_scalar_prefetch=0,
            grid=(grid,),
            in_specs=[
                pl.BlockSpec((5, block_rows, lanes), lambda i: (0, i, 0)),
                pl.BlockSpec((5, block_rows, lanes), lambda i: (0, i, 0)),
                pl.BlockSpec((block_rows, lanes), lambda i: (i, 0)),
            ],
            out_specs=out_spec),
        compiler_params=pltpu.CompilerParams(
            dimension_semantics=("parallel",)),
        cost_estimate=cost,
    )(pred_t, tgt_t, w_full)

    # weight_reduce_loss semantics (mmdet @weighted_loss)
    if reduction == 'none':
        loss = result.reshape(n_pad)[:n]
    else:
        total = result.sum()   # padded boxes contribute 0 (weight mask)
        if reduction == 'mean':
            denom = n if avg_factor is None else avg_factor
            loss = total / denom
        else:  # 'sum'
            if avg_factor is not None:
                raise ValueError('avg_factor can not be used with reduction="sum"')
            loss = total
    return loss * loss_weight


def _gwd_reference(pred, target, weight=None, *, fun='log1p', tau=0.0,
                   alpha=1.0, normalize=True, reduction='mean'):
    """Pure-JAX reference of the same forward (mirrors the PyTorch code)."""
    eps = _EPS
    pred = pred.astype(jnp.float32)
    target = target.astype(jnp.float32)

    def to_gaussian(b):
        xy = b[..., :2]
        wh = jnp.clip(b[..., 2:4], eps, 1e7)
        r = b[..., 4]
        c, s = jnp.cos(r), jnp.sin(r)
        R = jnp.stack([jnp.stack([c, -s], -1), jnp.stack([s, c], -1)], -2)
        S2 = jnp.zeros(b.shape[:-1] + (2, 2)).at[..., 0, 0].set(
            (0.5 * wh[..., 0]) ** 2).at[..., 1, 1].set((0.5 * wh[..., 1]) ** 2)
        sigma = R @ S2 @ jnp.swapaxes(R, -1, -2)
        return xy, sigma

    xy_p, Sp = to_gaussian(pred)
    xy_t, St = to_gaussian(target)
    xy_distance = ((xy_p - xy_t) ** 2).sum(-1)
    whr = jnp.trace(Sp, axis1=-2, axis2=-1) + jnp.trace(St, axis1=-2, axis2=-1)
    t_tr = jnp.trace(Sp @ St, axis1=-2, axis2=-1)
    t_det_sqrt = jnp.sqrt(jnp.maximum(
        jnp.linalg.det(Sp) * jnp.linalg.det(St), eps))
    whr = whr - 2.0 * jnp.sqrt(jnp.maximum(t_tr + 2.0 * t_det_sqrt, eps))
    distance = jnp.sqrt(jnp.maximum(xy_distance + alpha * alpha * whr, eps))
    if normalize:
        scale = 2.0 * jnp.maximum(jnp.sqrt(jnp.maximum(
            jnp.sqrt(jnp.maximum(t_det_sqrt, eps)), eps)), eps)
        distance = distance / scale
    if fun == 'log1p':
        distance = jnp.log1p(distance)
    elif fun == 'sqrt':
        distance = jnp.sqrt(jnp.maximum(distance, eps))
    if tau >= 1.0:
        distance = 1.0 - 1.0 / (tau + distance)
    if weight is not None:
        distance = distance * weight
    if reduction == 'mean':
        return distance.mean()
    if reduction == 'sum':
        return distance.sum()
    return distance


if __name__ == "__main__":
    key = jax.random.PRNGKey(0)
    k1, k2, k3, k4, k5, k6, k7 = jax.random.split(key, 7)
    N = 200  # number of rotated boxes

    def make_boxes(kx, kw, kr):
        xy = jax.random.uniform(kx, (N, 2), minval=-32.0, maxval=32.0)
        wh = jax.random.uniform(kw, (N, 2), minval=1.0, maxval=16.0)
        r = jax.random.uniform(kr, (N, 1), minval=-3.1, maxval=3.1)
        return jnp.concatenate([xy, wh, r], axis=-1).astype(jnp.float32)

    pred = make_boxes(k1, k2, k3)
    target = make_boxes(k4, k5, k6)
    weight = jax.random.uniform(k7, (N,), minval=0.5, maxval=1.5)

    # Default GDLoss('gwd', 'xy_wh_r', fun='log1p', tau=0.0) with mean reduction.
    loss_mean = jax.block_until_ready(
        gd_loss_gwd(pred, target, weight=weight, reduction='mean'))
    ref_mean = _gwd_reference(pred, target, weight=weight, reduction='mean')
    assert jnp.isfinite(loss_mean), "loss is not finite"
    assert jnp.allclose(loss_mean, ref_mean, rtol=1e-4, atol=1e-5), (loss_mean, ref_mean)

    # Sum reduction (exercises the fused partial-sum path with different glue).
    loss_sum = jax.block_until_ready(
        gd_loss_gwd(pred, target, weight=weight, reduction='sum'))
    ref_sum = _gwd_reference(pred, target, weight=weight, reduction='sum')
    assert jnp.allclose(loss_sum, ref_sum, rtol=1e-4, atol=1e-4), (loss_sum, ref_sum)

    # None reduction (exercises the dense per-box output path).
    loss_none = jax.block_until_ready(
        gd_loss_gwd(pred, target, weight=weight, reduction='none'))
    ref_none = _gwd_reference(pred, target, weight=weight, reduction='none')
    assert loss_none.shape == (N,)
    assert jnp.allclose(loss_none, ref_none, rtol=2e-4, atol=1e-5), float(
        jnp.max(jnp.abs(loss_none - ref_none)))

    print("KERNEL_OK")
</pallas_src>

<mosaic_0001>
module attributes {stable_mosaic.version = 11 : i64} {
  func.func @_gwd_kernel(%arg0: i32, %arg1: memref<5x8x128xf32, #tpu.memory_space<vmem>>, %arg2: memref<5x8x128xf32, #tpu.memory_space<vmem>>, %arg3: memref<8x128xf32, #tpu.memory_space<vmem>>, %arg4: memref<8x128xf32, #tpu.memory_space<vmem>>) attributes {dimension_semantics = [#tpu.dimension_semantics<parallel>], iteration_bounds = array<i64: 1>, scalar_prefetch = 0 : i64, scratch_operands = 0 : i64, tpu.core_type = #tpu.core_type<tc>, window_params = [{transform_indices = @transform_0, window_bounds = array<i64: 5, 8, 128>}, {transform_indices = @transform_1, window_bounds = array<i64: 5, 8, 128>}, {transform_indices = @transform_2, window_bounds = array<i64: 8, 128>}, {transform_indices = @transform_3, window_bounds = array<i64: 8, 128>}]} {
    %c0 = arith.constant 0 : index
    %c0_0 = arith.constant 0 : index
    %c0_1 = arith.constant 0 : index
    %0 = vector.load %arg1[%c0, %c0_0, %c0_1] : memref<5x8x128xf32, #tpu.memory_space<vmem>>, vector<1x8x128xf32>
    %1 = vector.shape_cast %0 : vector<1x8x128xf32> to vector<8x128xf32>
    %c1 = arith.constant 1 : index
    %c0_2 = arith.constant 0 : index
    %c0_3 = arith.constant 0 : index
    %2 = vector.load %arg1[%c1, %c0_2, %c0_3] : memref<5x8x128xf32, #tpu.memory_space<vmem>>, vector<1x8x128xf32>
    %3 = vector.shape_cast %2 : vector<1x8x128xf32> to vector<8x128xf32>
    %c2 = arith.constant 2 : index
    %c0_4 = arith.constant 0 : index
    %c0_5 = arith.constant 0 : index
    %4 = vector.load %arg1[%c2, %c0_4, %c0_5] : memref<5x8x128xf32, #tpu.memory_space<vmem>>, vector<1x8x128xf32>
    %5 = vector.shape_cast %4 : vector<1x8x128xf32> to vector<8x128xf32>
    %cst = arith.constant 1.000000e-07 : f32
    %cst_6 = arith.constant 1.000000e+07 : f32
    %6 = vector.broadcast %cst : f32 to vector<8x128xf32>
    %7 = arith.maximumf %6, %5 : vector<8x128xf32>
    %8 = vector.broadcast %cst_6 : f32 to vector<8x128xf32>
    %9 = arith.minimumf %8, %7 : vector<8x128xf32>
    %c3 = arith.constant 3 : index
    %c0_7 = arith.constant 0 : index
    %c0_8 = arith.constant 0 : index
    %10 = vector.load %arg1[%c3, %c0_7, %c0_8] : memref<5x8x128xf32, #tpu.memory_space<vmem>>, vector<1x8x128xf32>
    %11 = vector.shape_cast %10 : vector<1x8x128xf32> to vector<8x128xf32>
    %cst_9 = arith.constant 1.000000e-07 : f32
    %cst_10 = arith.constant 1.000000e+07 : f32
    %12 = vector.broadcast %cst_9 : f32 to vector<8x128xf32>
    %13 = arith.maximumf %12, %11 : vector<8x128xf32>
    %14 = vector.broadcast %cst_10 : f32 to vector<8x128xf32>
    %15 = arith.minimumf %14, %13 : vector<8x128xf32>
    %c4 = arith.constant 4 : index
    %c0_11 = arith.constant 0 : index
    %c0_12 = arith.constant 0 : index
    %16 = vector.load %arg1[%c4, %c0_11, %c0_12] : memref<5x8x128xf32, #tpu.memory_space<vmem>>, vector<1x8x128xf32>
    %17 = vector.shape_cast %16 : vector<1x8x128xf32> to vector<8x128xf32>
    %18 = math.cos %17 : vector<8x128xf32>
    %19 = math.sin %17 : vector<8x128xf32>
    %cst_13 = arith.constant 5.000000e-01 : f32
    %20 = vector.broadcast %cst_13 : f32 to vector<8x128xf32>
    %21 = arith.mulf %20, %9 : vector<8x128xf32>
    %22 = arith.mulf %21, %21 : vector<8x128xf32>
    %cst_14 = arith.constant 5.000000e-01 : f32
    %23 = vector.broadcast %cst_14 : f32 to vector<8x128xf32>
    %24 = arith.mulf %23, %15 : vector<8x128xf32>
    %25 = arith.mulf %24, %24 : vector<8x128xf32>
    %26 = arith.mulf %18, %18 : vector<8x128xf32>
    %27 = arith.mulf %26, %22 : vector<8x128xf32>
    %28 = arith.mulf %19, %19 : vector<8x128xf32>
    %29 = arith.mulf %28, %25 : vector<8x128xf32>
    %30 = arith.addf %27, %29 : vector<8x128xf32>
    %31 = arith.mulf %18, %19 : vector<8x128xf32>
    %32 = arith.subf %22, %25 : vector<8x128xf32>
    %33 = arith.mulf %31, %32 : vector<8x128xf32>
    %34 = arith.mulf %19, %19 : vector<8x128xf32>
    %35 = arith.mulf %34, %22 : vector<8x128xf32>
    %36 = arith.mulf %18, %18 : vector<8x128xf32>
    %37 = arith.mulf %36, %25 : vector<8x128xf32>
    %38 = arith.addf %35, %37 : vector<8x128xf32>
    %c0_15 = arith.constant 0 : index
    %c0_16 = arith.constant 0 : index
    %c0_17 = arith.constant 0 : index
    %39 = vector.load %arg2[%c0_15, %c0_16, %c0_17] : memref<5x8x128xf32, #tpu.memory_space<vmem>>, vector<1x8x128xf32>
    %40 = vector.shape_cast %39 : vector<1x8x128xf32> to vector<8x128xf32>
    %c1_18 = arith.constant 1 : index
    %c0_19 = arith.constant 0 : index
    %c0_20 = arith.constant 0 : index
    %41 = vector.load %arg2[%c1_18, %c0_19, %c0_20] : memref<5x8x128xf32, #tpu.memory_space<vmem>>, vector<1x8x128xf32>
    %42 = vector.shape_cast %41 : vector<1x8x128xf32> to vector<8x128xf32>
    %c2_21 = arith.constant 2 : index
    %c0_22 = arith.constant 0 : index
    %c0_23 = arith.constant 0 : index
    %43 = vector.load %arg2[%c2_21, %c0_22, %c0_23] : memref<5x8x128xf32, #tpu.memory_space<vmem>>, vector<1x8x128xf32>
    %44 = vector.shape_cast %43 : vector<1x8x128xf32> to vector<8x128xf32>
    %cst_24 = arith.constant 1.000000e-07 : f32
    %cst_25 = arith.constant 1.000000e+07 : f32
    %45 = vector.broadcast %cst_24 : f32 to vector<8x128xf32>
    %46 = arith.maximumf %45, %44 : vector<8x128xf32>
    %47 = vector.broadcast %cst_25 : f32 to vector<8x128xf32>
    %48 = arith.minimumf %47, %46 : vector<8x128xf32>
    %c3_26 = arith.constant 3 : index
    %c0_27 = arith.constant 0 : index
    %c0_28 = arith.constant 0 : index
    %49 = vector.load %arg2[%c3_26, %c0_27, %c0_28] : memref<5x8x128xf32, #tpu.memory_space<vmem>>, vector<1x8x128xf32>
    %50 = vector.shape_cast %49 : vector<1x8x128xf32> to vector<8x128xf32>
    %cst_29 = arith.constant 1.000000e-07 : f32
    %cst_30 = arith.constant 1.000000e+07 : f32
    %51 = vector.broadcast %cst_29 : f32 to vector<8x128xf32>
    %52 = arith.maximumf %51, %50 : vector<8x128xf32>
    %53 = vector.broadcast %cst_30 : f32 to vector<8x128xf32>
    %54 = arith.minimumf %53, %52 : vector<8x128xf32>
    %c4_31 = arith.constant 4 : index
    %c0_32 = arith.constant 0 : index
    %c0_33 = arith.constant 0 : index
    %55 = vector.load %arg2[%c4_31, %c0_32, %c0_33] : memref<5x8x128xf32, #tpu.memory_space<vmem>>, vector<1x8x128xf32>
    %56 = vector.shape_cast %55 : vector<1x8x128xf32> to vector<8x128xf32>
    %57 = math.cos %56 : vector<8x128xf32>
    %58 = math.sin %56 : vector<8x128xf32>
    %cst_34 = arith.constant 5.000000e-01 : f32
    %59 = vector.broadcast %cst_34 : f32 to vector<8x128xf32>
    %60 = arith.mulf %59, %48 : vector<8x128xf32>
    %61 = arith.mulf %60, %60 : vector<8x128xf32>
    %cst_35 = arith.constant 5.000000e-01 : f32
    %62 = vector.broadcast %cst_35 : f32 to vector<8x128xf32>
    %63 = arith.mulf %62, %54 : vector<8x128xf32>
    %64 = arith.mulf %63, %63 : vector<8x128xf32>
    %65 = arith.mulf %57, %57 : vector<8x128xf32>
    %66 = arith.mulf %65, %61 : vector<8x128xf32>
    %67 = arith.mulf %58, %58 : vector<8x128xf32>
    %68 = arith.mulf %67, %64 : vector<8x128xf32>
    %69 = arith.addf %66, %68 : vector<8x128xf32>
    %70 = arith.mulf %57, %58 : vector<8x128xf32>
    %71 = arith.subf %61, %64 : vector<8x128xf32>
    %72 = arith.mulf %70, %71 : vector<8x128xf32>
    %73 = arith.mulf %58, %58 : vector<8x128xf32>
    %74 = arith.mulf %73, %61 : vector<8x128xf32>
    %75 = arith.mulf %57, %57 : vector<8x128xf32>
    %76 = arith.mulf %75, %64 : vector<8x128xf32>
    %77 = arith.addf %74, %76 : vector<8x128xf32>
    %78 = arith.subf %1, %40 : vector<8x128xf32>
    %79 = arith.mulf %78, %78 : vector<8x128xf32>
    %80 = arith.subf %3, %42 : vector<8x128xf32>
    %81 = arith.mulf %80, %80 : vector<8x128xf32>
    %82 = arith.addf %79, %81 : vector<8x128xf32>
    %83 = arith.addf %30, %38 : vector<8x128xf32>
    %84 = arith.addf %69, %77 : vector<8x128xf32>
    %85 = arith.addf %83, %84 : vector<8x128xf32>
    %86 = arith.mulf %30, %69 : vector<8x128xf32>
    %cst_36 = arith.constant 2.000000e+00 : f32
    %87 = vector.broadcast %cst_36 : f32 to vector<8x128xf32>
    %88 = arith.mulf %87, %33 : vector<8x128xf32>
    %89 = arith.mulf %88, %72 : vector<8x128xf32>
    %90 = arith.addf %86, %89 : vector<8x128xf32>
    %91 = arith.mulf %38, %77 : vector<8x128xf32>
    %92 = arith.addf %90, %91 : vector<8x128xf32>
    %93 = arith.mulf %30, %38 : vector<8x128xf32>
    %94 = arith.mulf %33, %33 : vector<8x128xf32>
    %95 = arith.subf %93, %94 : vector<8x128xf32>
    %96 = arith.mulf %69, %77 : vector<8x128xf32>
    %97 = arith.mulf %72, %72 : vector<8x128xf32>
    %98 = arith.subf %96, %97 : vector<8x128xf32>
    %99 = arith.mulf %95, %98 : vector<8x128xf32>
    %cst_37 = arith.constant 1.000000e-07 : f32
    %100 = vector.broadcast %cst_37 : f32 to vector<8x128xf32>
    %101 = arith.maximumf %99, %100 : vector<8x128xf32>
    %102 = math.sqrt %101 : vector<8x128xf32>
    %cst_38 = arith.constant 2.000000e+00 : f32
    %103 = vector.broadcast %cst_38 : f32 to vector<8x128xf32>
    %104 = arith.mulf %103, %102 : vector<8x128xf32>
    %105 = arith.addf %92, %104 : vector<8x128xf32>
    %cst_39 = arith.constant 1.000000e-07 : f32
    %106 = vector.broadcast %cst_39 : f32 to vector<8x128xf32>
    %107 = arith.maximumf %105, %106 : vector<8x128xf32>
    %108 = math.sqrt %107 : vector<8x128xf32>
    %cst_40 = arith.constant 2.000000e+00 : f32
    %109 = vector.broadcast %cst_40 : f32 to vector<8x128xf32>
    %110 = arith.mulf %109, %108 : vector<8x128xf32>
    %111 = arith.subf %85, %110 : vector<8x128xf32>
    %cst_41 = arith.constant 1.000000e+00 : f32
    %112 = vector.broadcast %cst_41 : f32 to vector<8x128xf32>
    %113 = arith.mulf %112, %111 : vector<8x128xf32>
    %114 = arith.addf %82, %113 : vector<8x128xf32>
    %cst_42 = arith.constant 1.000000e-07 : f32
    %115 = vector.broadcast %cst_42 : f32 to vector<8x128xf32>
    %116 = arith.maximumf %114, %115 : vector<8x128xf32>
    %117 = math.sqrt %116 : vector<8x128xf32>
    %cst_43 = arith.constant 1.000000e-07 : f32
    %118 = vector.broadcast %cst_43 : f32 to vector<8x128xf32>
    %119 = arith.maximumf %102, %118 : vector<8x128xf32>
    %120 = math.sqrt %119 : vector<8x128xf32>
    %121 = math.rsqrt %120 : vector<8x128xf32>
    %cst_44 = arith.constant 5.000000e-01 : f32
    %122 = vector.broadcast %cst_44 : f32 to vector<8x128xf32>
    %123 = arith.mulf %122, %121 : vector<8x128xf32>
    %124 = arith.mulf %117, %123 : vector<8x128xf32>
    %125 = math.log1p %124 : vector<8x128xf32>
    %c0_45 = arith.constant 0 : index
    %c0_46 = arith.constant 0 : index
    %126 = vector.load %arg3[%c0_45, %c0_46] : memref<8x128xf32, #tpu.memory_space<vmem>>, vector<8x128xf32>
    %127 = arith.mulf %125, %126 : vector<8x128xf32>
    %c0_47 = arith.constant 0 : index
    %c0_48 = arith.constant 0 : index
    %128 = vector.load %arg4[%c0_47, %c0_48] : memref<8x128xf32, #tpu.memory_space<vmem>>, vector<8x128xf32>
    tpu.vector_store %arg4[%c0_47, %c0_48], %127 {strides = array<i32>} : memref<8x128xf32, #tpu.memory_space<vmem>>, vector<8x128xf32>,
    return
  }
  func.func @transform_0(%arg0: i32) -> (i32, i32, i32) {
    %c0_i32 = arith.constant 0 : i32
    %c0_i32_0 = arith.constant 0 : i32
    %c0_i32_1 = arith.constant 0 : i32
    return %c0_i32, %arg0, %c0_i32_0 : i32, i32, i32
  }
  func.func @transform_1(%arg0: i32) -> (i32, i32, i32) {
    %c0_i32 = arith.constant 0 : i32
    %c0_i32_0 = arith.constant 0 : i32
    %c0_i32_1 = arith.constant 0 : i32
    return %c0_i32, %arg0, %c0_i32_0 : i32, i32, i32
  }
  func.func @transform_2(%arg0: i32) -> (i32, i32) {
    %c0_i32 = arith.constant 0 : i32
    %c0_i32_0 = arith.constant 0 : i32
    return %arg0, %c0_i32 : i32, i32
  }
  func.func @transform_3(%arg0: i32) -> (i32, i32) {
    %c0_i32 = arith.constant 0 : i32
    %c0_i32_0 = arith.constant 0 : i32
    return %arg0, %c0_i32 : i32, i32
  }
}

</mosaic_0001>

<llo_original>
// kernel: tpu_custom_call.1
$region0: #{tpu_custom_call.1}
  #allocation0 [shape = 'u32[]', space=smem, size = 0x4, offset = 0x4, fixed_abs, tag = 'smem constant byte address 0x4 - core index']
  #allocation1 [shape = 'u32[144,128]{1,0:T(1,128)}', space=vmem, size = 0x12000, scoped, tag = 'internal scratch']
  %s0 = inlined_call_operand.hbm [shape: f32[5,8,128], index: 0, kind: input, shape index: {}]
  %s1 = inlined_call_operand.hbm [shape: f32[5,8,128], index: 1, kind: input, shape index: {}]
  %s2 = inlined_call_operand.hbm [shape: f32[8,128], index: 2, kind: input, shape index: {}]
  %s3 = inlined_call_operand.hbm [shape: f32[8,128], index: 3, kind: output, shape index: {}]
  %s4 = sld [smem:[#allocation0]]
  $region34: #{tpu_custom_call.1} parent=0
    _
  %s6 = ssub.s32 1, %s4
  %s7 = scalar_select 0, %s6, %s4
  $region1: #{tpu_custom_call.1} parent=0
    #allocation2 [shape = 'u8[20480]{0}', space=vmem, size = 0x5000, scoped, tag = 'input window, operand 0, single buffered']
    #allocation3 [shape = 's32[1]{0}', space=sflag, size = 0x4, scoped, tag = 'scoped memory for tpu_custom_call.1']
    #allocation4 [shape = 's32[1]{0}', space=sflag, size = 0x4, scoped, tag = 'scoped memory for tpu_custom_call.1']
    #allocation5 [shape = 'u8[20480]{0}', space=vmem, size = 0x5000, scoped, tag = 'input window, operand 1, single buffered']
    #allocation6 [shape = 's32[1]{0}', space=sflag, size = 0x4, scoped, tag = 'scoped memory for tpu_custom_call.1']
    #allocation7 [shape = 'u8[4096]{0}', space=vmem, size = 0x1000, scoped, tag = 'input window, operand 2, single buffered']
    #allocation8 [shape = 'u8[4096]{0}', space=vmem, size = 0x1000, scoped, tag = 'output window, operand 0, single buffered']
    %8 = vsyncpa [#allocation3], 0
    %9 = vsyncpa [#allocation6], 0
    %10 = vsyncpa [#allocation4], 0
    // Predicated region
    $region2: #{tpu_custom_call.1} parent=1 // pred_check
      _
    $region3: #{tpu_custom_call.1} parent=1 // pred_check_branch
      %12 = sbr.rel (0) target = $region5
    $region4: #{tpu_custom_call.1} parent=1 // pred_region
      %s14 = ssub.s32 640, 640
      %15 = vsyncadd [#allocation3], %s14
      %s16 = sshll.u32 [#allocation2], 4
      %s17 = int_to_ptr.vmem [resolvable:$true] %s16
      %22 = dma.hbm_to_vmem [thread:$0]  %s0, 640, %s17, [#allocation3], 128, 128, 8
    $region5: #{tpu_custom_call.1} parent=1 // pred_fallthru
      _
    // Predicated region
    $region6: #{tpu_custom_call.1} parent=1 // pred_check
      _
    $region7: #{tpu_custom_call.1} parent=1 // pred_check_branch
      %24 = sbr.rel (0) target = $region9
    $region8: #{tpu_custom_call.1} parent=1 // pred_region
      %s26 = ssub.s32 640, 640
      %27 = vsyncadd [#allocation6], %s26
      %s28 = sshll.u32 [#allocation5], 4
      %s29 = int_to_ptr.vmem [resolvable:$true] %s28
      %34 = dma.hbm_to_vmem [thread:$0]  %s1, 640, %s29, [#allocation6], 128, 128, 8
    $region9: #{tpu_custom_call.1} parent=1 // pred_fallthru
      _
    // Predicated region
    $region10: #{tpu_custom_call.1} parent=1 // pred_check
      _
    $region11: #{tpu_custom_call.1} parent=1 // pred_check_branch
      %36 = sbr.rel (0) target = $region13
    $region12: #{tpu_custom_call.1} parent=1 // pred_region
      %s38 = ssub.s32 128, 128
      %39 = vsyncadd [#allocation6], %s38
      %s41 = sshll.u32 [#allocation7], 4
      %s42 = int_to_ptr.vmem [resolvable:$true] %s41
      %44 = dma.hbm_to_vmem [thread:$0]  %s2, 128, %s42, [#allocation6]
    $region13: #{tpu_custom_call.1} parent=1 // pred_fallthru
      _
    // Predicated region
    $region14: #{tpu_custom_call.1} parent=1 // pred_check
      _
    $region15: #{tpu_custom_call.1} parent=1 // pred_check_branch
      %46 = sbr.rel (0) target = $region17
    $region16: #{tpu_custom_call.1} parent=1 // pred_region
      %47 = dma.done [#allocation3], 640
    $region17: #{tpu_custom_call.1} parent=1 // pred_fallthru
      _
    // Predicated region
    $region18: #{tpu_custom_call.1} parent=1 // pred_check
      _
    $region19: #{tpu_custom_call.1} parent=1 // pred_check_branch
      %49 = sbr.rel (0) target = $region21
    $region20: #{tpu_custom_call.1} parent=1 // pred_region
      %50 = dma.done [#allocation6], 640
    $region21: #{tpu_custom_call.1} parent=1 // pred_fallthru
      _
    // Predicated region
    $region22: #{tpu_custom_call.1} parent=1 // pred_check
      _
    $region23: #{tpu_custom_call.1} parent=1 // pred_check_branch
      %52 = sbr.rel (0) target = $region25
    $region24: #{tpu_custom_call.1} parent=1 // pred_region
      %53 = dma.done [#allocation6], 128
    $region25: #{tpu_custom_call.1} parent=1 // pred_fallthru
      _
    %v54 = vld [vmem:[#allocation2] sm:$0xff]
    %s55 = scalar_lea.vmem [#allocation2], 8
    %v56 = vld [vmem:[%s55] sm:$0xff]
    %s57 = scalar_lea.vmem [#allocation2], 16
    %v58 = vld [vmem:[%s57] sm:$0xff]
    %v59 = vmax.f32 %v58, 1e-07
    %v60 = vmin.f32 %v59, 10000000.0
    %s61 = scalar_lea.vmem [#allocation2], 24
    %v62 = vld [vmem:[%s61] sm:$0xff]
    %v63 = vmax.f32 %v62, 1e-07
    %v64 = vmin.f32 %v63, 10000000.0
    %s65 = scalar_lea.vmem [#allocation2], 32
    %v66 = vld [vmem:[%s65] sm:$0xff]
    %v67 = vand.u32 2147483647, %v66
    %vm68 = vcmp.le.f32.partialorder %v67, 0.7853982
    %vm69 = vcmp.lt.s32.totalorder %v66, 0
    %v70 = vand.u32 %v66, 2139095040
    %v71 = vshrl.u32 %v70, 23
    %v72 = vsub.s32 %v71, 127
    %v73 = vand.u32 2147483647, %v66
    %v74 = vand.u32 %v73, 8388607
    %v75 = vor.u32 %v74, 8388608
    %v76 = vsub.s32 0, %v75
    %v77 = vadd.s32 %v72, 1
    %vm78 = vcmp.gt.s32.totalorder %v77, 0
    %v79 = vsel %vm78, %v77, 0
    %v80 = vshrl.u32 %v79, 5
    %v81 = vand.u32 %v79, 31
    %v82 = vsub.s32 32, %v81
    %v83 = vshrl.u32 683565275, %v82
    %v84 = vshll.u32 683565275, %v81
    %v85 = vshrl.u32 2475754826, %v82
    %v86 = vor.u32 %v84, %v85
    %v87 = vshll.u32 2475754826, %v81
    %v88 = vshrl.u32 2131351028, %v82
    %v89 = vor.u32 %v87, %v88
    %v90 = vshll.u32 2131351028, %v81
    %v91 = vshrl.u32 2102212464, %v82
    %v92 = vor.u32 %v90, %v91
    %v93 = vshll.u32 2102212464, %v81
    %v94 = vshrl.u32 920167782, %v82
    %v95 = vor.u32 %v93, %v94
    %v96 = vshll.u32 920167782, %v81
    %v97 = vshrl.u32 1326507024, %v82
    %v98 = vor.u32 %v96, %v97
    %vm99 = vcmp.lt.s32.totalorder %v80, 1
    %vm100 = vcmp.lt.s32.totalorder %v80, 2
    %vm101 = vcmp.lt.s32.totalorder %v80, 3
    %vm102 = vcmp.lt.s32.totalorder %v80, 4
    %v103 = vsel %vm99, %v83, %v86
    %v104 = vsel %vm102, %v92, 2102212464
    %v105 = vsel %vm101, %v89, %v104
    %v106 = vsel %vm100, %v103, %v105
    %v107 = vsel %vm99, %v86, %v89
    %v108 = vsel %vm102, %v95, 920167782
    %v109 = vsel %vm101, %v92, %v108
    %v110 = vsel %vm100, %v107, %v109
    %v111 = vsel %vm99, %v89, %v92
    %v112 = vsel %vm102, %v98, 1326507024
    %v113 = vsel %vm101, %v95, %v112
    %v114 = vsel %vm100, %v111, %v113
    %v115 = vshll.u32 %v75, 8
    %v116 = vmul.u32.u64.compose %v115, %v114
    %v117 = vextract.low.u32 %v116
    %v118 = vextract.high.u32 %v116
    %v119 = vmul.u32.u64.compose %v115, %v110
    %v120 = vextract.low.u32 %v119
    %v121 = vextract.high.u32 %v119
    %v122 = vmul.u32 %v115, %v106
    %v123 = vadd.s32 %v118, %v120
    %vm124 = vc.u32 %v118, %v120
    %v125 = vadd.s32 %v121, 1
    %v126 = vsel %vm124, %v125, %v121
    %v127 = vadd.s32 %v122, %v126
    %v128 = vadd.s32 %v127, 536870912
    %v129 = vshrl.u32 %v128, 30
    %v130 = vshll.u32 %v129, 30
    %v131 = vsub.s32 %v127, %v130
    %vm132 = vcmp.lt.s32.totalorder %v131, 0
    %v133 = vsub.s32 0, %v131
    %v134 = vsel %vm132, %v133, %v131
    %v135 = vclz %v134
    %v136 = vsub.s32 %v135, 2
    %vm137 = vcmp.gt.s32.totalorder 0, %v136
    %v138 = vsel %vm137, 0, %v136
    %v139 = vsub.s32 32, %v138
    %v140 = vshll.u32 %v131, %v138
    %v141 = vshrl.u32 %v123, %v139
    %v142 = vor.u32 %v140, %v141
    %v143 = vsub.s32 4294967266, %v138
    %v144 = vadd.s32 %v143, 127
    %v145 = vshll.u32 %v144, 23
    %v146 = vor.u32 4788187, %v145
    %v147 = vand.u32 2147483647, %v146
    %v149 = vcvt.s32.f32 %v142
    %v150 = vmul.f32 %v149, %v147
    %v151 = vxor.u32 %v150, 2147483648
    %v152 = vsel %vm69, %v151, %v150
    %v153 = vsub.s32 4, %v129
    %v154 = vsel %vm69, %v153, %v129
    %v155 = vsel %vm68, %v66, %v152
    %v156 = vsel %vm68, 0, %v154
    %v157 = vcosq.f32.pop %v155
    %v158 = vsinq.f32.pop %v155
    %vm159 = vweird.f32 %v66
    %v160 = vand.u32 %v156, 3
    %vm161 = vcmp.lt.s32.totalorder %v160, 2
    %vm162 = vcmp.eq.s32.totalorder %v160, 0
    %v163 = vxor.u32 %v158, 2147483648
    %v164 = vsel %vm162, %v157, %v163
    %vm165 = vcmp.eq.s32.totalorder %v160, 2
    %v166 = vxor.u32 %v157, 2147483648
    %v167 = vsel %vm165, %v166, %v158
    %v168 = vsel %vm161, %v164, %v167
    %v169 = vsel %vm159, nan, %v168
    %v170 = vand.u32 2147483647, %v66
    %vm171 = vcmp.le.f32.partialorder %v170, 0.7853982
    %vm172 = vcmp.lt.s32.totalorder %v66, 0
    %v173 = vand.u32 %v66, 2139095040
    %v174 = vshrl.u32 %v173, 23
    %v175 = vsub.s32 %v174, 127
    %v176 = vand.u32 2147483647, %v66
    %v177 = vand.u32 %v176, 8388607
    %v178 = vor.u32 %v177, 8388608
    %v179 = vsub.s32 0, %v178
    %v180 = vadd.s32 %v175, 1
    %vm181 = vcmp.gt.s32.totalorder %v180, 0
    %v182 = vsel %vm181, %v180, 0
    %v183 = vshrl.u32 %v182, 5
    %v184 = vand.u32 %v182, 31
    %v185 = vsub.s32 32, %v184
    %v186 = vshrl.u32 683565275, %v185
    %v187 = vshll.u32 683565275, %v184
    %v188 = vshrl.u32 2475754826, %v185
    %v189 = vor.u32 %v187, %v188
    %v190 = vshll.u32 2475754826, %v184
    %v191 = vshrl.u32 2131351028, %v185
    %v192 = vor.u32 %v190, %v191
    %v193 = vshll.u32 2131351028, %v184
    %v194 = vshrl.u32 2102212464, %v185
    %v195 = vor.u32 %v193, %v194
    %v196 = vshll.u32 2102212464, %v184
    %v197 = vshrl.u32 920167782, %v185
    %v198 = vor.u32 %v196, %v197
    %v199 = vshll.u32 920167782, %v184
    %v200 = vshrl.u32 1326507024, %v185
    %v201 = vor.u32 %v199, %v200
    %vm202 = vcmp.lt.s32.totalorder %v183, 1
    %vm203 = vcmp.lt.s32.totalorder %v183, 2
    %vm204 = vcmp.lt.s32.totalorder %v183, 3
    %vm205 = vcmp.lt.s32.totalorder %v183, 4
    %v206 = vsel %vm202, %v186, %v189
    %v207 = vsel %vm205, %v195, 2102212464
    %v208 = vsel %vm204, %v192, %v207
    %v209 = vsel %vm203, %v206, %v208
    %v210 = vsel %vm202, %v189, %v192
    %v211 = vsel %vm205, %v198, 920167782
    %v212 = vsel %vm204, %v195, %v211
    %v213 = vsel %vm203, %v210, %v212
    %v214 = vsel %vm202, %v192, %v195
    %v215 = vsel %vm205, %v201, 1326507024
    %v216 = vsel %vm204, %v198, %v215
    %v217 = vsel %vm203, %v214, %v216
    %v218 = vshll.u32 %v178, 8
    %v219 = vmul.u32.u64.compose %v218, %v217
    %v220 = vextract.low.u32 %v219
    %v221 = vextract.high.u32 %v219
    %v222 = vmul.u32.u64.compose %v218, %v213
    %v223 = vextract.low.u32 %v222
    %v224 = vextract.high.u32 %v222
    %v225 = vmul.u32 %v218, %v209
    %v226 = vadd.s32 %v221, %v223
    %vm227 = vc.u32 %v221, %v223
    %v228 = vadd.s32 %v224, 1
    %v229 = vsel %vm227, %v228, %v224
    %v230 = vadd.s32 %v225, %v229
    %v231 = vadd.s32 %v230, 536870912
    %v232 = vshrl.u32 %v231, 30
    %v233 = vshll.u32 %v232, 30
    %v234 = vsub.s32 %v230, %v233
    %vm235 = vcmp.lt.s32.totalorder %v234, 0
    %v236 = vsub.s32 0, %v234
    %v237 = vsel %vm235, %v236, %v234
    %v238 = vclz %v237
    %v239 = vsub.s32 %v238, 2
    %vm240 = vcmp.gt.s32.totalorder 0, %v239
    %v241 = vsel %vm240, 0, %v239
    %v242 = vsub.s32 32, %v241
    %v243 = vshll.u32 %v234, %v241
    %v244 = vshrl.u32 %v226, %v242
    %v245 = vor.u32 %v243, %v244
    %v246 = vsub.s32 4294967266, %v241
    %v247 = vadd.s32 %v246, 127
    %v248 = vshll.u32 %v247, 23
    %v249 = vor.u32 4788187, %v248
    %v250 = vand.u32 2147483647, %v249
    %v252 = vcvt.s32.f32 %v245
    %v253 = vmul.f32 %v252, %v250
    %v254 = vxor.u32 %v253, 2147483648
    %v255 = vsel %vm172, %v254, %v253
    %v256 = vsub.s32 4, %v232
    %v257 = vsel %vm172, %v256, %v232
    %v258 = vsel %vm171, %v66, %v255
    %v259 = vsel %vm171, 0, %v257
    %v260 = vcosq.f32.pop %v258
    %v261 = vsinq.f32.pop %v258
    %vm262 = vweird.f32 %v66
    %v263 = vadd.s32 %v259, 3
    %v264 = vand.u32 %v263, 3
    %vm265 = vcmp.lt.s32.totalorder %v264, 2
    %vm266 = vcmp.eq.s32.totalorder %v264, 0
    %v267 = vxor.u32 %v261, 2147483648
    %v268 = vsel %vm266, %v260, %v267
    %vm269 = vcmp.eq.s32.totalorder %v264, 2
    %v270 = vxor.u32 %v260, 2147483648
    %v271 = vsel %vm269, %v270, %v261
    %v272 = vsel %vm265, %v268, %v271
    %v273 = vsel %vm262, nan, %v272
    %v274 = vmul.f32 %v60, 0.5
    %v275 = vmul.f32 %v274, %v274
    %v276 = vmul.f32 %v64, 0.5
    %v277 = vmul.f32 %v276, %v276
    %v278 = vmul.f32 %v169, %v169
    %v279 = vmul.f32 %v278, %v275
    %v280 = vmul.f32 %v273, %v273
    %v281 = vmul.f32 %v280, %v277
    %v282 = vadd.f32 %v279, %v281
    %v283 = vmul.f32 %v169, %v273
    %v284 = vsub.f32 %v275, %v277
    %v285 = vmul.f32 %v283, %v284
    %v286 = vmul.f32 %v280, %v275
    %v287 = vmul.f32 %v278, %v277
    %v288 = vadd.f32 %v286, %v287
    %v289 = vld [vmem:[#allocation5] sm:$0xff]
    %s290 = scalar_lea.vmem [#allocation5], 8
    %v291 = vld [vmem:[%s290] sm:$0xff]
    %s292 = scalar_lea.vmem [#allocation5], 16
    %v293 = vld [vmem:[%s292] sm:$0xff]
    %v294 = vmax.f32 %v293, 1e-07
    %v295 = vmin.f32 %v294, 10000000.0
    %s296 = scalar_lea.vmem [#allocation5], 24
    %v297 = vld [vmem:[%s296] sm:$0xff]
    %v298 = vmax.f32 %v297, 1e-07
    %v299 = vmin.f32 %v298, 10000000.0
    %s300 = scalar_lea.vmem [#allocation5], 32
    %v301 = vld [vmem:[%s300] sm:$0xff]
    %v302 = vand.u32 2147483647, %v301
    %vm303 = vcmp.le.f32.partialorder %v302, 0.7853982
    %vm304 = vcmp.lt.s32.totalorder %v301, 0
    %v305 = vand.u32 %v301, 2139095040
    %v306 = vshrl.u32 %v305, 23
    %v307 = vsub.s32 %v306, 127
    %v308 = vand.u32 2147483647, %v301
    %v309 = vand.u32 %v308, 8388607
    %v310 = vor.u32 %v309, 8388608
    %v311 = vsub.s32 0, %v310
    %v312 = vadd.s32 %v307, 1
    %vm313 = vcmp.gt.s32.totalorder %v312, 0
    %v314 = vsel %vm313, %v312, 0
    %v315 = vshrl.u32 %v314, 5
    %v316 = vand.u32 %v314, 31
    %v317 = vsub.s32 32, %v316
    %v318 = vshrl.u32 683565275, %v317
    %v319 = vshll.u32 683565275, %v316
    %v320 = vshrl.u32 2475754826, %v317
    %v321 = vor.u32 %v319, %v320
    %v322 = vshll.u32 2475754826, %v316
    %v323 = vshrl.u32 2131351028, %v317
    %v324 = vor.u32 %v322, %v323
    %v325 = vshll.u32 2131351028, %v316
    %v326 = vshrl.u32 2102212464, %v317
    %v327 = vor.u32 %v325, %v326
    %v328 = vshll.u32 2102212464, %v316
    %v329 = vshrl.u32 920167782, %v317
    %v330 = vor.u32 %v328, %v329
    %v331 = vshll.u32 920167782, %v316
    %v332 = vshrl.u32 1326507024, %v317
    %v333 = vor.u32 %v331, %v332
    %vm334 = vcmp.lt.s32.totalorder %v315, 1
    %vm335 = vcmp.lt.s32.totalorder %v315, 2
    %vm336 = vcmp.lt.s32.totalorder %v315, 3
    %vm337 = vcmp.lt.s32.totalorder %v315, 4
    %v338 = vsel %vm334, %v318, %v321
    %v339 = vsel %vm337, %v327, 2102212464
    %v340 = vsel %vm336, %v324, %v339
    %v341 = vsel %vm335, %v338, %v340
    %v342 = vsel %vm334, %v321, %v324
    %v343 = vsel %vm337, %v330, 920167782
    %v344 = vsel %vm336, %v327, %v343
    %v345 = vsel %vm335, %v342, %v344
    %v346 = vsel %vm334, %v324, %v327
    %v347 = vsel %vm337, %v333, 1326507024
    %v348 = vsel %vm336, %v330, %v347
    %v349 = vsel %vm335, %v346, %v348
    %v350 = vshll.u32 %v310, 8
    %v351 = vmul.u32.u64.compose %v350, %v349
    %v352 = vextract.low.u32 %v351
    %v353 = vextract.high.u32 %v351
    %v354 = vmul.u32.u64.compose %v350, %v345
    %v355 = vextract.low.u32 %v354
    %v356 = vextract.high.u32 %v354
    %v357 = vmul.u32 %v350, %v341
    %v358 = vadd.s32 %v353, %v355
    %vm359 = vc.u32 %v353, %v355
    %v360 = vadd.s32 %v356, 1
    %v361 = vsel %vm359, %v360, %v356
    %v362 = vadd.s32 %v357, %v361
    %v363 = vadd.s32 %v362, 536870912
    %v364 = vshrl.u32 %v363, 30
    %v365 = vshll.u32 %v364, 30
    %v366 = vsub.s32 %v362, %v365
    %vm367 = vcmp.lt.s32.totalorder %v366, 0
    %v368 = vsub.s32 0, %v366
    %v369 = vsel %vm367, %v368, %v366
    %v370 = vclz %v369
    %v371 = vsub.s32 %v370, 2
    %vm372 = vcmp.gt.s32.totalorder 0, %v371
    %v373 = vsel %vm372, 0, %v371
    %v374 = vsub.s32 32, %v373
    %v375 = vshll.u32 %v366, %v373
    %v376 = vshrl.u32 %v358, %v374
    %v377 = vor.u32 %v375, %v376
    %v378 = vsub.s32 4294967266, %v373
    %v379 = vadd.s32 %v378, 127
    %v380 = vshll.u32 %v379, 23
    %v381 = vor.u32 4788187, %v380
    %v382 = vand.u32 2147483647, %v381
    %v384 = vcvt.s32.f32 %v377
    %v385 = vmul.f32 %v384, %v382
    %v386 = vxor.u32 %v385, 2147483648
    %v387 = vsel %vm304, %v386, %v385
    %v388 = vsub.s32 4, %v364
    %v389 = vsel %vm304, %v388, %v364
    %v390 = vsel %vm303, %v301, %v387
    %v391 = vsel %vm303, 0, %v389
    %v392 = vcosq.f32.pop %v390
    %v393 = vsinq.f32.pop %v390
    %vm394 = vweird.f32 %v301
    %v395 = vand.u32 %v391, 3
    %vm396 = vcmp.lt.s32.totalorder %v395, 2
    %vm397 = vcmp.eq.s32.totalorder %v395, 0
    %v398 = vxor.u32 %v393, 2147483648
    %v399 = vsel %vm397, %v392, %v398
    %vm400 = vcmp.eq.s32.totalorder %v395, 2
    %v401 = vxor.u32 %v392, 2147483648
    %v402 = vsel %vm400, %v401, %v393
    %v403 = vsel %vm396, %v399, %v402
    %v404 = vsel %vm394, nan, %v403
    %v405 = vand.u32 2147483647, %v301
    %vm406 = vcmp.le.f32.partialorder %v405, 0.7853982
    %vm407 = vcmp.lt.s32.totalorder %v301, 0
    %v408 = vand.u32 %v301, 2139095040
    %v409 = vshrl.u32 %v408, 23
    %v410 = vsub.s32 %v409, 127
    %v411 = vand.u32 2147483647, %v301
    %v412 = vand.u32 %v411, 8388607
    %v413 = vor.u32 %v412, 8388608
    %v414 = vsub.s32 0, %v413
    %v415 = vadd.s32 %v410, 1
    %vm416 = vcmp.gt.s32.totalorder %v415, 0
    %v417 = vsel %vm416, %v415, 0
    %v418 = vshrl.u32 %v417, 5
    %v419 = vand.u32 %v417, 31
    %v420 = vsub.s32 32, %v419
    %v421 = vshrl.u32 683565275, %v420
    %v422 = vshll.u32 683565275, %v419
    %v423 = vshrl.u32 2475754826, %v420
    %v424 = vor.u32 %v422, %v423
    %v425 = vshll.u32 2475754826, %v419
    %v426 = vshrl.u32 2131351028, %v420
    %v427 = vor.u32 %v425, %v426
    %v428 = vshll.u32 2131351028, %v419
    %v429 = vshrl.u32 2102212464, %v420
    %v430 = vor.u32 %v428, %v429
    %v431 = vshll.u32 2102212464, %v419
    %v432 = vshrl.u32 920167782, %v420
    %v433 = vor.u32 %v431, %v432
    %v434 = vshll.u32 920167782, %v419
    %v435 = vshrl.u32 1326507024, %v420
    %v436 = vor.u32 %v434, %v435
    %vm437 = vcmp.lt.s32.totalorder %v418, 1
    %vm438 = vcmp.lt.s32.totalorder %v418, 2
    %vm439 = vcmp.lt.s32.totalorder %v418, 3
    %vm440 = vcmp.lt.s32.totalorder %v418, 4
    %v441 = vsel %vm437, %v421, %v424
    %v442 = vsel %vm440, %v430, 2102212464
    %v443 = vsel %vm439, %v427, %v442
    %v444 = vsel %vm438, %v441, %v443
    %v445 = vsel %vm437, %v424, %v427
    %v446 = vsel %vm440, %v433, 920167782
    %v447 = vsel %vm439, %v430, %v446
    %v448 = vsel %vm438, %v445, %v447
    %v449 = vsel %vm437, %v427, %v430
    %v450 = vsel %vm440, %v436, 1326507024
    %v451 = vsel %vm439, %v433, %v450
    %v452 = vsel %vm438, %v449, %v451
    %v453 = vshll.u32 %v413, 8
    %v454 = vmul.u32.u64.compose %v453, %v452
    %v455 = vextract.low.u32 %v454
    %v456 = vextract.high.u32 %v454
    %v457 = vmul.u32.u64.compose %v453, %v448
    %v458 = vextract.low.u32 %v457
    %v459 = vextract.high.u32 %v457
    %v460 = vmul.u32 %v453, %v444
    %v461 = vadd.s32 %v456, %v458
    %vm462 = vc.u32 %v456, %v458
    %v463 = vadd.s32 %v459, 1
    %v464 = vsel %vm462, %v463, %v459
    %v465 = vadd.s32 %v460, %v464
    %v466 = vadd.s32 %v465, 536870912
    %v467 = vshrl.u32 %v466, 30
    %v468 = vshll.u32 %v467, 30
    %v469 = vsub.s32 %v465, %v468
    %vm470 = vcmp.lt.s32.totalorder %v469, 0
    %v471 = vsub.s32 0, %v469
    %v472 = vsel %vm470, %v471, %v469
    %v473 = vclz %v472
    %v474 = vsub.s32 %v473, 2
    %vm475 = vcmp.gt.s32.totalorder 0, %v474
    %v476 = vsel %vm475, 0, %v474
    %v477 = vsub.s32 32, %v476
    %v478 = vshll.u32 %v469, %v476
    %v479 = vshrl.u32 %v461, %v477
    %v480 = vor.u32 %v478, %v479
    %v481 = vsub.s32 4294967266, %v476
    %v482 = vadd.s32 %v481, 127
    %v483 = vshll.u32 %v482, 23
    %v484 = vor.u32 4788187, %v483
    %v485 = vand.u32 2147483647, %v484
    %v487 = vcvt.s32.f32 %v480
    %v488 = vmul.f32 %v487, %v485
    %v489 = vxor.u32 %v488, 2147483648
    %v490 = vsel %vm407, %v489, %v488
    %v491 = vsub.s32 4, %v467
    %v492 = vsel %vm407, %v491, %v467
    %v493 = vsel %vm406, %v301, %v490
    %v494 = vsel %vm406, 0, %v492
    %v495 = vcosq.f32.pop %v493
    %v496 = vsinq.f32.pop %v493
    %vm497 = vweird.f32 %v301
    %v498 = vadd.s32 %v494, 3
    %v499 = vand.u32 %v498, 3
    %vm500 = vcmp.lt.s32.totalorder %v499, 2
    %vm501 = vcmp.eq.s32.totalorder %v499, 0
    %v502 = vxor.u32 %v496, 2147483648
    %v503 = vsel %vm501, %v495, %v502
    %vm504 = vcmp.eq.s32.totalorder %v499, 2
    %v505 = vxor.u32 %v495, 2147483648
    %v506 = vsel %vm504, %v505, %v496
    %v507 = vsel %vm500, %v503, %v506
    %v508 = vsel %vm497, nan, %v507
    %v509 = vmul.f32 %v295, 0.5
    %v510 = vmul.f32 %v509, %v509
    %v511 = vmul.f32 %v299, 0.5
    %v512 = vmul.f32 %v511, %v511
    %v513 = vmul.f32 %v404, %v404
    %v514 = vmul.f32 %v513, %v510
    %v515 = vmul.f32 %v508, %v508
    %v516 = vmul.f32 %v515, %v512
    %v517 = vadd.f32 %v514, %v516
    %v518 = vmul.f32 %v404, %v508
    %v519 = vsub.f32 %v510, %v512
    %v520 = vmul.f32 %v518, %v519
    %v521 = vmul.f32 %v515, %v510
    %v522 = vmul.f32 %v513, %v512
    %v523 = vadd.f32 %v521, %v522
    %v524 = vsub.f32 %v54, %v289
    %v525 = vmul.f32 %v524, %v524
    %v526 = vsub.f32 %v56, %v291
    %v527 = vmul.f32 %v526, %v526
    %v528 = vadd.f32 %v525, %v527
    %v529 = vadd.f32 %v282, %v288
    %v530 = vadd.f32 %v517, %v523
    %v531 = vadd.f32 %v529, %v530
    %v532 = vmul.f32 %v282, %v517
    %v533 = vmul.f32 %v285, 2.0
    %v534 = vmul.f32 %v533, %v520
    %v535 = vadd.f32 %v532, %v534
    %v536 = vmul.f32 %v288, %v523
    %v537 = vadd.f32 %v535, %v536
    %v538 = vmul.f32 %v282, %v288
    %v539 = vmul.f32 %v285, %v285
    %v540 = vsub.f32 %v538, %v539
    %v541 = vmul.f32 %v517, %v523
    %v542 = vmul.f32 %v520, %v520
    %v543 = vsub.f32 %v541, %v542
    %v544 = vmul.f32 %v540, %v543
    %v545 = vmax.f32 %v544, 1e-07
    %v546 = vrsqrt.pop %v545
    %v547 = vmul.f32 %v545, %v546
    %vm548 = vcmp.eq.f32.partialorder %v545, inf
    %v549 = vsel %vm548, %v545, %v547
    %vm550 = vcmp.eq.f32.partialorder %v545, 0.0
    %v551 = vand.u32 %v545, 2147483648
    %v552 = vsel %vm550, %v551, %v549
    %v553 = vmul.f32 %v552, 2.0
    %v554 = vadd.f32 %v537, %v553
    %v555 = vmax.f32 %v554, 1e-07
    %v556 = vrsqrt.pop %v555
    %v557 = vmul.f32 %v555, %v556
    %vm558 = vcmp.eq.f32.partialorder %v555, inf
    %v559 = vsel %vm558, %v555, %v557
    %vm560 = vcmp.eq.f32.partialorder %v555, 0.0
    %v561 = vand.u32 %v555, 2147483648
    %v562 = vsel %vm560, %v561, %v559
    %v563 = vmul.f32 %v562, 2.0
    %v564 = vsub.f32 %v531, %v563
    %v565 = vadd.f32 %v528, %v564
    %v566 = vmax.f32 %v565, 1e-07
    %v567 = vrsqrt.pop %v566
    %v568 = vmul.f32 %v566, %v567
    %vm569 = vcmp.eq.f32.partialorder %v566, inf
    %v570 = vsel %vm569, %v566, %v568
    %vm571 = vcmp.eq.f32.partialorder %v566, 0.0
    %v572 = vand.u32 %v566, 2147483648
    %v573 = vsel %vm571, %v572, %v570
    %v574 = vmax.f32 %v552, 1e-07
    %v575 = vrsqrt.pop %v574
    %v576 = vmul.f32 %v574, %v575
    %vm577 = vcmp.eq.f32.partialorder %v574, inf
    %v578 = vsel %vm577, %v574, %v576
    %vm579 = vcmp.eq.f32.partialorder %v574, 0.0
    %v580 = vand.u32 %v574, 2147483648
    %v581 = vsel %vm579, %v580, %v578
    %v582 = vrsqrt.pop %v581
    %v583 = vmul.f32 %v582, 0.5
    %v584 = vmul.f32 %v573, %v583
    %v585 = vadd.f32 %v584, 1.0
    %v586 = vlog2.pop %v585
    %v587 = vmul.f32 %v586, 0.6931472
    %v588 = vmul.f32 -0.5, %v584
    %v589 = vadd.f32 %v588, 1.0
    %v590 = vmul.f32 %v589, %v584
    %v591 = vand.u32 2147483647, %v584
    %vm592 = vcmp.lt.f32.partialorder %v591, 0.0004427343
    %v593 = vsel %vm592, %v590, %v587
    %v594 = vld [vmem:[#allocation7] sm:$0xff]
    %v595 = vmul.f32 %v593, %v594
    %596 = vst [vmem:[#allocation8] sm:$0xff] %v595
    // Predicated region
    $region26: #{tpu_custom_call.1} parent=1 // pred_check
      _
    $region27: #{tpu_custom_call.1} parent=1 // pred_check_branch
      %598 = sbr.rel (0) target = $region29
    $region28: #{tpu_custom_call.1} parent=1 // pred_region
      %s600 = ssub.s32 128, 128
      %601 = vsyncadd [#allocation4], %s600
      %s603 = sshll.u32 [#allocation8], 4
      %s604 = int_to_ptr.vmem [resolvable:$true] %s603
      %606 = dma.vmem_to_hbm [thread:$0]  %s604, 128, %s3, [#allocation4]
    $region29: #{tpu_custom_call.1} parent=1 // pred_fallthru
      _
    // Predicated region
    $region30: #{tpu_custom_call.1} parent=1 // pred_check
      _
    $region31: #{tpu_custom_call.1} parent=1 // pred_check_branch
      %608 = sbr.rel (0) target = $region33
    $region32: #{tpu_custom_call.1} parent=1 // pred_region
      %609 = dma.done [#allocation4], 128
    $region33: #{tpu_custom_call.1} parent=1 // pred_fallthru
      _
    %610 = vsyncpa [#allocation3], 1
    %611 = vsyncpa [#allocation6], 1
    %612 = vsyncpa [#allocation4], 1

</llo_original>
